<compile_context>
chip_gen: v7x
topology: tpu7x:2x2x1
jax: 0.10.0
libtpu: 0.0.40
codegen_flags: <defaults>
</compile_context>

<pallas_src>
import functools

import jax
import jax.numpy as jnp
from jax import lax
from jax.experimental import pallas as pl
from jax.experimental.pallas import tpu as pltpu


def _round_up(x, m):
    return (x + m - 1) // m * m


# ----------------------------------------------------------------------------
# Pallas kernel 1: single-pass matmul (bf16 x bf16 -> f32 acc) with fused
# epilogue: + bias [+ residual] [+ ReLU]; output stored as bf16 activations.
# ----------------------------------------------------------------------------
def _mm_kernel(a_ref, b_ref, bias_ref, o_ref, *, relu):
    acc = jnp.dot(a_ref[...], b_ref[...], preferred_element_type=jnp.float32)
    r = acc + bias_ref[...]
    if relu:
        r = jnp.maximum(r, 0.0)
    o_ref[...] = r.astype(o_ref.dtype)


def _mm_res_kernel(a_ref, b_ref, bias_ref, res_ref, o_ref, *, relu):
    acc = jnp.dot(a_ref[...], b_ref[...], preferred_element_type=jnp.float32)
    r = acc + bias_ref[...] + res_ref[...].astype(jnp.float32)
    if relu:
        r = jnp.maximum(r, 0.0)
    o_ref[...] = r.astype(o_ref.dtype)


def matmul_bias(a, b, bias, *, relu=False, residual=None):
    """out = a @ b + bias [+ residual] [ReLU].  a:(M,Ka) b:(Kb,N) bias:(N,)."""
    M, Ka = a.shape
    Kb, N = b.shape
    a = a.astype(jnp.bfloat16)
    if Ka < Kb:                      # only the stem (7*7*3 = 147 -> 160) hits this
        a = jnp.pad(a, ((0, 0), (0, Kb - Ka)))

    # Problem-sized M tiling: small M -> one full-size tile (padded to 8 only),
    # large M -> 256-row tiles so the parallel axis exposes work to both v7x TCs.
    if M > 256:
        tm = 256
        Mp = _round_up(M, tm)
    else:
        Mp = _round_up(M, 8)
        tm = Mp
    if Mp > M:
        a = jnp.pad(a, ((0, Mp - M), (0, 0)))
        if residual is not None:
            residual = jnp.pad(residual, ((0, Mp - M), (0, 0)))

    in_specs = [
        pl.BlockSpec((tm, Kb), lambda i: (i, 0)),   # A tile (full K)
        pl.BlockSpec((Kb, N), lambda i: (0, 0)),    # whole weight, resident
        pl.BlockSpec((1, N), lambda i: (0, 0)),     # bias row
    ]
    args = [a, b, bias.reshape(1, N)]
    if residual is not None:
        in_specs.append(pl.BlockSpec((tm, N), lambda i: (i, 0)))
        args.append(residual.astype(jnp.bfloat16))
        kernel = functools.partial(_mm_res_kernel, relu=relu)
    else:
        kernel = functools.partial(_mm_kernel, relu=relu)

    out = pl.pallas_call(
        kernel,
        out_shape=jax.ShapeDtypeStruct((Mp, N), jnp.bfloat16),
        grid_spec=pltpu.PrefetchScalarGridSpec(
            num_scalar_prefetch=0,
            grid=(Mp // tm,),
            in_specs=in_specs,
            out_specs=pl.BlockSpec((tm, N), lambda i: (i, 0)),
        ),
        compiler_params=pltpu.CompilerParams(
            dimension_semantics=("parallel",)),
    )(*args)
    return out[:M] if Mp > M else out


# ----------------------------------------------------------------------------
# Pallas kernel 2: fused Linear embed + BatchNorm1d (training-mode batch stats,
# biased variance).  Everything fits in one VMEM block (M = batch, Ep = 128-padded).
# ----------------------------------------------------------------------------
def _embed_bn_kernel(x_ref, w_ref, bias_ref, g_ref, b_ref, o_ref):
    f = jnp.dot(x_ref[...], w_ref[...],
                preferred_element_type=jnp.float32) + bias_ref[...]
    mean = jnp.mean(f, axis=0, keepdims=True)
    var = jnp.mean((f - mean) ** 2, axis=0, keepdims=True)
    o_ref[...] = (f - mean) * lax.rsqrt(var + 1e-5) * g_ref[...] + b_ref[...]


def embed_batchnorm(x, w, bias, gamma, beta):
    n = x.shape[0]
    ep = w.shape[1]
    return pl.pallas_call(
        _embed_bn_kernel,
        out_shape=jax.ShapeDtypeStruct((n, ep), jnp.float32),
    )(x.astype(jnp.bfloat16), w, bias.reshape(1, ep),
      gamma.reshape(1, ep), beta.reshape(1, ep))


# ----------------------------------------------------------------------------
# Convolutions (NHWC, BN pre-folded into the weights)
# ----------------------------------------------------------------------------
def conv1x1(x, w, b, *, relu, residual=None):
    N, H, W, C = x.shape
    Cout = w.shape[1]
    res2 = None if residual is None else residual.reshape(N * H * W, Cout)
    y = matmul_bias(x.reshape(N * H * W, C), w, b, relu=relu, residual=res2)
    return y.reshape(N, H, W, Cout)


def conv_im2col(x, w, b, *, k, stride, pad, relu):
    # TODO(synk): im2col patch extraction still materializes a k*k-expanded A in HBM
    # via XLA slices/concat; fusing the (dy,dx) shifts into the kernel's K axis would
    # cut that traffic ~k^2x for large images.
    N, H, W, C = x.shape
    Cout = w.shape[1]
    xp = jnp.pad(x, ((0, 0), (pad, pad), (pad, pad), (0, 0)))
    OH = (H + 2 * pad - k) // stride + 1
    OW = (W + 2 * pad - k) // stride + 1
    patches = []
    for dy in range(k):
        for dx in range(k):
            patches.append(xp[:, dy:dy + stride * (OH - 1) + 1:stride,
                              dx:dx + stride * (OW - 1) + 1:stride, :])
    a = jnp.concatenate(patches, axis=-1).reshape(N * OH * OW, k * k * C)
    y = matmul_bias(a, w, b, relu=relu)
    return y.reshape(N, OH, OW, Cout)


def maxpool2d_3x3_s2_p1(x):
    # TODO(synk): tiny pooling glue kept in plain JAX (lax.reduce_window).
    return lax.reduce_window(
        x, jnp.array(-jnp.inf, x.dtype), lax.max,
        window_dimensions=(1, 3, 3, 1),
        window_strides=(1, 2, 2, 1),
        padding=((0, 0), (1, 1), (1, 1), (0, 0)))


# ----------------------------------------------------------------------------
# Deterministic parameter construction (ResNet-50 topology, BN folded,
# weights pre-transposed to the NHWC im2col layout and pre-cast to bf16).
# ----------------------------------------------------------------------------
class KeyGen:
    def __init__(self, seed):
        self.key = jax.random.PRNGKey(seed)

    def __call__(self):
        self.key, k = jax.random.split(self.key)
        return k


def _conv_bn(kg, cin, cout, kh, kw):
    """Conv + frozen BN folded.  Returns (weight[(K_pad, cout)] bf16, bias[cout] f32)
    with K ordered (dy, dx, c) to match the NHWC im2col patch concatenation."""
    w = jax.random.normal(kg(), (cout, cin, kh, kw), jnp.float32) * jnp.sqrt(
        2.0 / (cin * kh * kw))
    gamma = 1.0 + 0.1 * jax.random.normal(kg(), (cout,), jnp.float32)
    beta = 0.1 * jax.random.normal(kg(), (cout,), jnp.float32)
    rmean = 0.1 * jax.random.normal(kg(), (cout,), jnp.float32)
    rvar = 1.0 + 0.5 * jax.random.uniform(kg(), (cout,), jnp.float32)
    scale = gamma * lax.rsqrt(rvar + 1e-5)
    wf = w * scale[:, None, None, None]
    bias = (beta - rmean * scale).astype(jnp.float32)
    wmat = wf.transpose(2, 3, 1, 0).reshape(kh * kw * cin, cout)  # (dy,dx,c) x cout
    kp = _round_up(kh * kw * cin, 16)
    if kp > wmat.shape[0]:
        wmat = jnp.pad(wmat, ((0, kp - wmat.shape[0]), (0, 0)))
    return wmat.astype(jnp.bfloat16), bias


def make_encoder_params(embed_size, seed=0):
    kg = KeyGen(seed)
    params = {"stem": _conv_bn(kg, 3, 64, 7, 7)}
    cfg = [(64, 3, 1), (128, 4, 2), (256, 6, 2), (512, 3, 2)]  # ResNet-50
    layers, cin = [], 64
    for width, nblocks, stride in cfg:
        blocks = []
        for bi in range(nblocks):
            s = stride if bi == 0 else 1
            p = {}
            p["w1"], p["b1"] = _conv_bn(kg, cin, width, 1, 1)
            p["w2"], p["b2"] = _conv_bn(kg, width, width, 3, 3)
            p["w3"], p["b3"] = _conv_bn(kg, width, 4 * width, 1, 1)
            if s != 1 or cin != 4 * width:
                p["wd"], p["bd"] = _conv_bn(kg, cin, 4 * width, 1, 1)
            blocks.append((p, s))
            cin = 4 * width
        layers.append(blocks)
    params["layers"] = layers

    fan_in = 2048  # resnet50 fc.in_features
    ep = _round_up(embed_size, 128)  # lane-padded embed dim (dense vst)
    we = jax.random.normal(kg(), (embed_size, fan_in), jnp.float32) / jnp.sqrt(fan_in)
    be = 0.01 * jax.random.normal(kg(), (embed_size,), jnp.float32)
    params["embed_w"] = jnp.pad(we.T, ((0, 0), (0, ep - embed_size))).astype(jnp.bfloat16)
    params["embed_b"] = jnp.pad(be, (0, ep - embed_size))
    params["bn_gamma"] = jnp.pad(jnp.ones((embed_size,), jnp.float32),
                                 (0, ep - embed_size))
    params["bn_beta"] = jnp.zeros((ep,), jnp.float32)
    params["embed_size"] = embed_size
    return params


# ----------------------------------------------------------------------------
# Forward pass (matches EncoderCNN.forward)
# ----------------------------------------------------------------------------
def _bottleneck(x, p, stride):
    out = conv1x1(x, p["w1"], p["b1"], relu=True)
    out = conv_im2col(out, p["w2"], p["b2"], k=3, stride=stride, pad=1, relu=True)
    if "wd" in p:
        xs = x[:, ::stride, ::stride, :] if stride > 1 else x
        identity = conv1x1(xs, p["wd"], p["bd"], relu=False)
    else:
        identity = x
    # conv3 (1x1) with the residual add + final ReLU fused into the matmul epilogue
    return conv1x1(out, p["w3"], p["b3"], relu=True, residual=identity)


def encoder_cnn_forward(params, images):
    x = jnp.transpose(images, (0, 2, 3, 1))          # NCHW -> NHWC once
    x = conv_im2col(x, *params["stem"], k=7, stride=2, pad=3, relu=True)
    x = maxpool2d_3x3_s2_p1(x)
    for blocks in params["layers"]:
        for p, s in blocks:
            x = _bottleneck(x, p, s)
    x = jnp.mean(x.astype(jnp.float32), axis=(1, 2))  # AdaptiveAvgPool2d(1) + view(N,-1)
    feats = embed_batchnorm(x, params["embed_w"], params["embed_b"],
                            params["bn_gamma"], params["bn_beta"])
    return feats[:, :params["embed_size"]]


if __name__ == "__main__":
    embed_size = 32
    params = make_encoder_params(embed_size, seed=0)
    images = jax.random.normal(jax.random.PRNGKey(0), (2, 3, 64, 64), jnp.float32)

    feats = encoder_cnn_forward(params, images)
    feats = jax.block_until_ready(feats)

    assert feats.shape == (2, embed_size), feats.shape
    assert feats.dtype == jnp.float32
    assert bool(jnp.all(jnp.isfinite(feats)))
    print("KERNEL_OK")
</pallas_src>

<mosaic_0001>
module attributes {stable_mosaic.version = 11 : i64} {
  func.func @_mm_kernel(%arg0: i32, %arg1: memref<256x160xbf16, #tpu.memory_space<vmem>>, %arg2: memref<160x64xbf16, #tpu.memory_space<vmem>>, %arg3: memref<1x64xf32, #tpu.memory_space<vmem>>, %arg4: memref<256x64xbf16, #tpu.memory_space<vmem>>) attributes {dimension_semantics = [#tpu.dimension_semantics<parallel>], iteration_bounds = array<i64: 8>, scalar_prefetch = 0 : i64, scratch_operands = 0 : i64, tpu.core_type = #tpu.core_type<tc>, window_params = [{transform_indices = @transform_0, window_bounds = array<i64: 256, 160>}, {pipeline_mode = #tpu.pipeline_mode<synchronous>, transform_indices = @transform_1, window_bounds = array<i64: 160, 64>}, {pipeline_mode = #tpu.pipeline_mode<synchronous>, transform_indices = @transform_2, window_bounds = array<i64: 1, 64>}, {transform_indices = @transform_3, window_bounds = array<i64: 256, 64>}]} {
    %c0 = arith.constant 0 : index
    %c0_0 = arith.constant 0 : index
    %0 = vector.load %arg1[%c0, %c0_0] : memref<256x160xbf16, #tpu.memory_space<vmem>>, vector<256x160xbf16>
    %c0_1 = arith.constant 0 : index
    %c0_2 = arith.constant 0 : index
    %1 = vector.load %arg2[%c0_1, %c0_2] : memref<160x64xbf16, #tpu.memory_space<vmem>>, vector<160x64xbf16>
    %cst = arith.constant dense<0.000000e+00> : vector<256x64xf32>
    %2 = tpu.matmul %0, %1, %cst {dimension_numbers = #tpu.dot_dimension_numbers<[1], [0], [0], [1], [0, 0, 1, 1], [], []>} : vector<256x160xbf16>, vector<160x64xbf16>, vector<256x64xf32> -> vector<256x64xf32>
    %c0_3 = arith.constant 0 : index
    %c0_4 = arith.constant 0 : index
    %3 = vector.load %arg3[%c0_3, %c0_4] : memref<1x64xf32, #tpu.memory_space<vmem>>, vector<1x64xf32>
    %4 = vector.broadcast %3 : vector<1x64xf32> to vector<256x64xf32>
    %5 = arith.addf %2, %4 : vector<256x64xf32>
    %cst_5 = arith.constant 0.000000e+00 : f32
    %6 = vector.broadcast %cst_5 : f32 to vector<256x64xf32>
    %7 = arith.maximumf %5, %6 : vector<256x64xf32>
    %8 = arith.truncf %7 : vector<256x64xf32> to vector<256x64xbf16>
    %c0_6 = arith.constant 0 : index
    %c0_7 = arith.constant 0 : index
    %9 = vector.load %arg4[%c0_6, %c0_7] : memref<256x64xbf16, #tpu.memory_space<vmem>>, vector<256x64xbf16>
    tpu.vector_store %arg4[%c0_6, %c0_7], %8 {strides = array<i32>} : memref<256x64xbf16, #tpu.memory_space<vmem>>, vector<256x64xbf16>,
    return
  }
  func.func @transform_0(%arg0: i32) -> (i32, i32) {
    %c0_i32 = arith.constant 0 : i32
    %c0_i32_0 = arith.constant 0 : i32
    return %arg0, %c0_i32 : i32, i32
  }
  func.func @transform_1(%arg0: i32) -> (i32, i32) {
    %c0_i32 = arith.constant 0 : i32
    %c0_i32_0 = arith.constant 0 : i32
    %c0_i32_1 = arith.constant 0 : i32
    return %c0_i32, %c0_i32_0 : i32, i32
  }
  func.func @transform_2(%arg0: i32) -> (i32, i32) {
    %c0_i32 = arith.constant 0 : i32
    %c0_i32_0 = arith.constant 0 : i32
    %c0_i32_1 = arith.constant 0 : i32
    return %c0_i32, %c0_i32_0 : i32, i32
  }
  func.func @transform_3(%arg0: i32) -> (i32, i32) {
    %c0_i32 = arith.constant 0 : i32
    %c0_i32_0 = arith.constant 0 : i32
    return %arg0, %c0_i32 : i32, i32
  }
}

</mosaic_0001>

<llo_original>
// kernel: tpu_custom_call.1
$region0: #{tpu_custom_call.1}
  #allocation0 [shape = 'u32[]', space=smem, size = 0x4, offset = 0x4, fixed_abs, tag = 'smem constant byte address 0x4 - core index']
  #allocation1 [shape = 'u32[144,128]{1,0:T(1,128)}', space=vmem, size = 0x12000, scoped, tag = 'internal scratch']
  %s0 = inlined_call_operand.vmem [shape: bf16[2048,160], index: 0, kind: input, shape index: {}]
  %s1 = inlined_call_operand.vmem [shape: bf16[160,64], index: 1, kind: input, shape index: {}]
  %s2 = inlined_call_operand.vmem [shape: f32[1,64], index: 2, kind: input, shape index: {}]
  %s3 = inlined_call_operand.vmem [shape: bf16[2048,64], index: 3, kind: output, shape index: {}]
  %s4 = sld [smem:[#allocation0]]
  $region45: #{tpu_custom_call.1} parent=0
    _
  %s6 = ssub.s32 1, %s4
  %s7 = scalar_select 0, %s6, %s4
  loop: start=0, step=1, limit=10
  $region2: #{tpu_custom_call.1} parent=0 // loop_pre_header
    _
  $region3: #{tpu_custom_call.1} parent=0 // loop_header
    %s9 = sphi 0, %s13
    %p10 = scmp.ge.s32.totalorder %s9, 10
    %s19 = sphi 0, %s21
    %s22 = sphi 0, %s19
    %s23 = sphi 0, %s22
    %s39 = sphi 0, %s23
    %s43 = sphi 0, %s43
    %s45 = sphi 0, %s43
    %s46 = sphi 0, %s45
    %s60 = sphi 0, %s46
    %s64 = sphi 0, %s64
    %s66 = sphi 0, %s64
    %s67 = sphi 0, %s66
    %s81 = sphi 0, %s67
    %s87 = sphi 0, %s89
    %s90 = sphi 0, %s87
    %s91 = sphi 0, %s90
    %s107 = sphi 0, %s91
  $region4: #{tpu_custom_call.1} parent=0 // loop_header_branch
    %12 = sbr.rel (%p10) target = $region8
  $region5: #{tpu_custom_call.1} parent=0 // loop_body
    %s14 = ssub.s32 %s9, 1
    %s15 = ssub.s32 %s9, 2
    %s16 = sadd.s32 %s9, 1
    %s17 = ssub.s32 %s9, %s16
    %p18 = scmp.eq.s32.totalorder %s17, 0
    %s20 = sadd.s32 %s19, 1
    %s21 = scalar_select %p18, %s19, %s20
    %p24 = pneg %p18
    %p25 = scmp.eq.s32.totalorder %s9, 7
    %p26 = por %p24, %p25
    %p27 = scmp.ne.s32.totalorder %s19, %s22
    %p28 = scmp.eq.s32.totalorder %s9, 0
    %p29 = por %p27, %p28
    %p30 = scmp.ne.s32.totalorder %s19, %s22
    %p31 = scmp.eq.s32.totalorder %s14, 7
    %p32 = por %p30, %p31
    %p33 = scmp.ne.s32.totalorder %s22, %s23
    %p34 = scmp.eq.s32.totalorder %s14, 0
    %p35 = por %p33, %p34
    %p36 = scmp.ne.s32.totalorder %s22, %s23
    %p37 = scmp.eq.s32.totalorder %s15, 7
    %p38 = por %p36, %p37
    %p40 = scmp.ne.s32.totalorder %s23, %s39
    %p41 = scmp.eq.s32.totalorder %s15, 0
    %p42 = por %p40, %p41
    %s44 = sadd.s32 %s43, 1
    %p47 = scmp.eq.s32.totalorder %s9, 7
    %p48 = scmp.ne.s32.totalorder %s43, %s45
    %p49 = scmp.eq.s32.totalorder %s9, 0
    %p50 = por %p48, %p49
    %p51 = scmp.ne.s32.totalorder %s43, %s45
    %p52 = scmp.eq.s32.totalorder %s14, 7
    %p53 = por %p51, %p52
    %p54 = scmp.ne.s32.totalorder %s45, %s46
    %p55 = scmp.eq.s32.totalorder %s14, 0
    %p56 = por %p54, %p55
    %p57 = scmp.ne.s32.totalorder %s45, %s46
    %p58 = scmp.eq.s32.totalorder %s15, 7
    %p59 = por %p57, %p58
    %p61 = scmp.ne.s32.totalorder %s46, %s60
    %p62 = scmp.eq.s32.totalorder %s15, 0
    %p63 = por %p61, %p62
    %s65 = sadd.s32 %s64, 1
    %p68 = scmp.eq.s32.totalorder %s9, 7
    %p69 = scmp.ne.s32.totalorder %s64, %s66
    %p70 = scmp.eq.s32.totalorder %s9, 0
    %p71 = por %p69, %p70
    %p72 = scmp.ne.s32.totalorder %s64, %s66
    %p73 = scmp.eq.s32.totalorder %s14, 7
    %p74 = por %p72, %p73
    %p75 = scmp.ne.s32.totalorder %s66, %s67
    %p76 = scmp.eq.s32.totalorder %s14, 0
    %p77 = por %p75, %p76
    %p78 = scmp.ne.s32.totalorder %s66, %s67
    %p79 = scmp.eq.s32.totalorder %s15, 7
    %p80 = por %p78, %p79
    %p82 = scmp.ne.s32.totalorder %s67, %s81
    %p83 = scmp.eq.s32.totalorder %s15, 0
    %p84 = por %p82, %p83
    %s85 = ssub.s32 %s9, %s16
    %p86 = scmp.eq.s32.totalorder %s85, 0
    %s88 = sadd.s32 %s87, 1
    %s89 = scalar_select %p86, %s87, %s88
    %p92 = pneg %p86
    %p93 = scmp.eq.s32.totalorder %s9, 7
    %p94 = por %p92, %p93
    %p95 = scmp.ne.s32.totalorder %s87, %s90
    %p96 = scmp.eq.s32.totalorder %s9, 0
    %p97 = por %p95, %p96
    %p98 = scmp.ne.s32.totalorder %s87, %s90
    %p99 = scmp.eq.s32.totalorder %s14, 7
    %p100 = por %p98, %p99
    %p101 = scmp.ne.s32.totalorder %s90, %s91
    %p102 = scmp.eq.s32.totalorder %s14, 0
    %p103 = por %p101, %p102
    %p104 = scmp.ne.s32.totalorder %s90, %s91
    %p105 = scmp.eq.s32.totalorder %s15, 7
    %p106 = por %p104, %p105
    %p108 = scmp.ne.s32.totalorder %s91, %s107
    %p109 = scmp.eq.s32.totalorder %s15, 0
    %p110 = por %p108, %p109
    %p111 = scmp.le.s32.totalorder 1, %s9
    %p112 = scmp.lt.s32.totalorder %s9, 9
    %p113 = pnand %p111, %p112
    %p114 = pneg %p113
    // Predicated region
    $region9: #{tpu_custom_call.1} parent=5 // pred_check
      _
    $region10: #{tpu_custom_call.1} parent=5 // pred_check_branch
      %116 = sbr.rel (%p113) target = $region12
    $region11: #{tpu_custom_call.1} parent=5 // pred_region
      %s117 = ssub.s32 %s9, 1
      // Predicated region
      $region13: #{tpu_custom_call.1} parent=11 // pred_check
        %p118 = pneg %p56
      $region14: #{tpu_custom_call.1} parent=11 // pred_check_branch
        %120 = sbr.rel (%p118) target = $region16
      $region15: #{tpu_custom_call.1} parent=11 // pred_region
        _
      $region16: #{tpu_custom_call.1} parent=11 // pred_fallthru
        _
      // Predicated region
      $region17: #{tpu_custom_call.1} parent=11 // pred_check
        %p121 = pneg %p77
      $region18: #{tpu_custom_call.1} parent=11 // pred_check_branch
        %123 = sbr.rel (%p121) target = $region20
      $region19: #{tpu_custom_call.1} parent=11 // pred_region
        _
      $region20: #{tpu_custom_call.1} parent=11 // pred_fallthru
        _
    $region12: #{tpu_custom_call.1} parent=5 // pred_fallthru
      _
    %p124 = scmp.lt.s32.totalorder %s9, 8
    // Predicated region
    $region21: #{tpu_custom_call.1} parent=5 // pred_check
      %p125 = pneg %p124
    $region22: #{tpu_custom_call.1} parent=5 // pred_check_branch
      %127 = sbr.rel (%p125) target = $region24
    $region23: #{tpu_custom_call.1} parent=5 // pred_region
      // Predicated region
      $region25: #{tpu_custom_call.1} parent=23 // pred_check
        %p128 = pneg %p29
      $region26: #{tpu_custom_call.1} parent=23 // pred_check_branch
        %130 = sbr.rel (%p128) target = $region28
      $region27: #{tpu_custom_call.1} parent=23 // pred_region
        %s131 = smul.u32 32, %s9
        %p132 = scmp.lt.s32.totalorder %s131, 255
        %s133 = scalar_select %p132, %s131, 255
        %s134 = smul.addr %s133, 2
        %s135 = smul.addr %s134, 4
        %s136 = scalar_lea.vmem %s0, %s135
        %s137 = smul.u32 32, %s9
      $region28: #{tpu_custom_call.1} parent=23 // pred_fallthru
        _
    $region24: #{tpu_custom_call.1} parent=5 // pred_fallthru
      _
    %p138 = scmp.le.s32.totalorder 1, %s9
    %p139 = scmp.lt.s32.totalorder %s9, 9
    %p140 = pnand %p138, %p139
    %p141 = pneg %p140
    // Predicated region
    $region29: #{tpu_custom_call.1} parent=5 // pred_check
      _
    $region30: #{tpu_custom_call.1} parent=5 // pred_check_branch
      %143 = sbr.rel (%p140) target = $region32
    $region31: #{tpu_custom_call.1} parent=5 // pred_region
      %s144 = ssub.s32 %s9, 1
      %s145 = smul.u32 32, %s14
      %p146 = scmp.lt.s32.totalorder %s145, 255
      %s147 = scalar_select %p146, %s145, 255
      %s148 = smul.addr %s147, 2
      %s149 = smul.addr %s148, 4
      %s150 = scalar_lea.vmem %s0, %s149
      %p151 = pneg %p35
      %p152 = pneg %p32
      %p153 = pneg %p56
      %p154 = pneg %p53
      %p155 = pneg %p77
      %p156 = pneg %p74
      %p157 = pneg %p103
      %p158 = pneg %p100
      %s159 = smul.u32 32, %s14
      %p160 = scmp.lt.s32.totalorder %s159, 255
      %s161 = scalar_select %p160, %s159, 255
      %s162 = smul.addr %s161, 4
      %s163 = scalar_lea.vmem %s3, %s162
      %s164 = smul.u32 32, %s14
      %p165 = scmp.lt.s32.totalorder %s164, 255
      %s166 = scalar_select %p165, %s164, 255
      %s167 = smul.addr %s166, 2
      %s168 = smul.addr %s167, 4
      %s169 = scalar_lea.vmem %s0, %s168
      %s170 = smul.u32 32, %s14
      %s171 = smul.u32 32, %s14
      %p172 = scmp.lt.s32.totalorder %s171, 255
      %s173 = scalar_select %p172, %s171, 255
      %s174 = smul.addr %s173, 4
      %s175 = scalar_lea.vmem %s3, %s174
      %s176 = smul.u32 32, %s14
      %v178 = vld [vmem:[%s169] sm:$0xff]
      %v179 = vld [vmem:[%s169 + $0x8] sm:$0xff]
      %v180 = vld [vmem:[%s169 + $0x10] sm:$0xff]
      %v181 = vld [vmem:[%s169 + $0x18] sm:$0xff]
      %v182 = vld [vmem:[%s169 + $0x20] sm:$0xff]
      %v183 = vld [vmem:[%s169 + $0x28] sm:$0xff]
      %v184 = vld [vmem:[%s169 + $0x30] sm:$0xff]
      %v185 = vld [vmem:[%s169 + $0x38] sm:$0xff]
      %v186 = vld [vmem:[%s169 + $0x40] sm:$0xff]
      %v187 = vld [vmem:[%s169 + $0x48] sm:$0xff]
      %v188 = vld [vmem:[%s169 + $0x50] sm:$0xff]
      %v189 = vld [vmem:[%s169 + $0x58] sm:$0xff]
      %v190 = vld [vmem:[%s169 + $0x60] sm:$0xff]
      %v191 = vld [vmem:[%s169 + $0x68] sm:$0xff]
      %v192 = vld [vmem:[%s169 + $0x70] sm:$0xff]
      %v193 = vld [vmem:[%s169 + $0x78] sm:$0xff]
      %v194 = vld [vmem:[%s169 + $0x80] sm:$0xff]
      %v195 = vld [vmem:[%s169 + $0x88] sm:$0xff]
      %v196 = vld [vmem:[%s169 + $0x90] sm:$0xff]
      %v197 = vld [vmem:[%s169 + $0x98] sm:$0xff]
      %v198 = vld [vmem:[%s169 + $0xa0] sm:$0xff]
      %v199 = vld [vmem:[%s169 + $0xa8] sm:$0xff]
      %v200 = vld [vmem:[%s169 + $0xb0] sm:$0xff]
      %v201 = vld [vmem:[%s169 + $0xb8] sm:$0xff]
      %v202 = vld [vmem:[%s169 + $0xc0] sm:$0xff]
      %v203 = vld [vmem:[%s169 + $0xc8] sm:$0xff]
      %v204 = vld [vmem:[%s169 + $0xd0] sm:$0xff]
      %v205 = vld [vmem:[%s169 + $0xd8] sm:$0xff]
      %v206 = vld [vmem:[%s169 + $0xe0] sm:$0xff]
      %v207 = vld [vmem:[%s169 + $0xe8] sm:$0xff]
      %v208 = vld [vmem:[%s169 + $0xf0] sm:$0xff]
      %v209 = vld [vmem:[%s169 + $0xf8] sm:$0xff]
      %v210 = vld [vmem:[%s1] sm:$0xf]
      %v211 = vld [vmem:[%s1 + $0x4] sm:$0xf]
      %v212 = vld [vmem:[%s1 + $0x8] sm:$0xf]
      %v213 = vld [vmem:[%s1 + $0xc] sm:$0xf]
      %v214 = vld [vmem:[%s1 + $0x10] sm:$0xf]
      %v215 = vld [vmem:[%s1 + $0x14] sm:$0xf]
      %v216 = vld [vmem:[%s1 + $0x18] sm:$0xf]
      %v217 = vld [vmem:[%s1 + $0x1c] sm:$0xf]
      %v218 = vld [vmem:[%s1 + $0x20] sm:$0xf]
      %v219 = vld [vmem:[%s1 + $0x24] sm:$0xf]
      %v220 = vld [vmem:[%s1 + $0x28] sm:$0xf]
      %v221 = vld [vmem:[%s1 + $0x2c] sm:$0xf]
      %v222 = vld [vmem:[%s1 + $0x30] sm:$0xf]
      %v223 = vld [vmem:[%s1 + $0x34] sm:$0xf]
      %v224 = vld [vmem:[%s1 + $0x38] sm:$0xf]
      %v225 = vld [vmem:[%s1 + $0x3c] sm:$0xf]
      %v226 = vld [vmem:[%s1 + $0x40] sm:$0xf]
      %v227 = vld [vmem:[%s1 + $0x44] sm:$0xf]
      %v228 = vld [vmem:[%s1 + $0x48] sm:$0xf]
      %v229 = vld [vmem:[%s1 + $0x4c] sm:$0xf]
      %v230 = vld [vmem:[%s2] sm:$0x1]
      %v232 = vlaneseq
      %v233 = vshrl.u32 %v232, 7
      %v234 = vsub.s32 0, %v233
      %v235 = vrot.slane %v230, %v234
      %v269 = vunpack.c.l.b16 %v178
      %v270 = vunpack.c.h.b16 %v178
      %v271 = vunpack.c.l.b16 %v179
      %v272 = vunpack.c.h.b16 %v179
      %v273 = vunpack.c.l.b16 %v180
      %v274 = vunpack.c.h.b16 %v180
      %v275 = vunpack.c.l.b16 %v181
      %v276 = vunpack.c.h.b16 %v181
      %v277 = vunpack.c.l.b16 %v182
      %v278 = vunpack.c.h.b16 %v182
      %v279 = vunpack.c.l.b16 %v183
      %v280 = vunpack.c.h.b16 %v183
      %v281 = vunpack.c.l.b16 %v184
      %v282 = vunpack.c.h.b16 %v184
      %v283 = vunpack.c.l.b16 %v185
      %v284 = vunpack.c.h.b16 %v185
      %v285 = vunpack.c.l.b16 %v186
      %v286 = vunpack.c.h.b16 %v186
      %v287 = vunpack.c.l.b16 %v187
      %v288 = vunpack.c.h.b16 %v187
      %v289 = vunpack.c.l.b16 %v188
      %v290 = vunpack.c.h.b16 %v188
      %v291 = vunpack.c.l.b16 %v189
      %v292 = vunpack.c.h.b16 %v189
      %v293 = vunpack.c.l.b16 %v190
      %v294 = vunpack.c.h.b16 %v190
      %v295 = vunpack.c.l.b16 %v191
      %v296 = vunpack.c.h.b16 %v191
      %v297 = vunpack.c.l.b16 %v192
      %v298 = vunpack.c.h.b16 %v192
      %v299 = vunpack.c.l.b16 %v193
      %v300 = vunpack.c.h.b16 %v193
      %v301 = vunpack.c.l.b16 %v194
      %v302 = vunpack.c.h.b16 %v194
      %v303 = vunpack.c.l.b16 %v195
      %v304 = vunpack.c.h.b16 %v195
      %v305 = vunpack.c.l.b16 %v196
      %v306 = vunpack.c.h.b16 %v196
      %v307 = vunpack.c.l.b16 %v197
      %v308 = vunpack.c.h.b16 %v197
      %v309 = vunpack.c.l.b16 %v198
      %v310 = vunpack.c.h.b16 %v198
      %v311 = vunpack.c.l.b16 %v199
      %v312 = vunpack.c.h.b16 %v199
      %v313 = vunpack.c.l.b16 %v200
      %v314 = vunpack.c.h.b16 %v200
      %v315 = vunpack.c.l.b16 %v201
      %v316 = vunpack.c.h.b16 %v201
      %v317 = vunpack.c.l.b16 %v202
      %v318 = vunpack.c.h.b16 %v202
      %v319 = vunpack.c.l.b16 %v203
      %v320 = vunpack.c.h.b16 %v203
      %v321 = vunpack.c.l.b16 %v204
      %v322 = vunpack.c.h.b16 %v204
      %v323 = vunpack.c.l.b16 %v205
      %v324 = vunpack.c.h.b16 %v205
      %v325 = vunpack.c.l.b16 %v206
      %v326 = vunpack.c.h.b16 %v206
      %v327 = vunpack.c.l.b16 %v207
      %v328 = vunpack.c.h.b16 %v207
      %v329 = vunpack.c.l.b16 %v208
      %v330 = vunpack.c.h.b16 %v208
      %v331 = vunpack.c.l.b16 %v209
      %v332 = vunpack.c.h.b16 %v209
      %v333 = vpack.c.b16 %v271, %v269
      %v334 = vpack.c.b16 %v272, %v270
      %v335 = vpack.c.b16 %v275, %v273
      %v336 = vpack.c.b16 %v276, %v274
      %v337 = vpack.c.b16 %v279, %v277
      %v338 = vpack.c.b16 %v280, %v278
      %v339 = vpack.c.b16 %v283, %v281
      %v340 = vpack.c.b16 %v284, %v282
      %v341 = vpack.c.b16 %v287, %v285
      %v342 = vpack.c.b16 %v288, %v286
      %v343 = vpack.c.b16 %v291, %v289
      %v344 = vpack.c.b16 %v292, %v290
      %v345 = vpack.c.b16 %v295, %v293
      %v346 = vpack.c.b16 %v296, %v294
      %v347 = vpack.c.b16 %v299, %v297
      %v348 = vpack.c.b16 %v300, %v298
      %v349 = vpack.c.b16 %v303, %v301
      %v350 = vpack.c.b16 %v304, %v302
      %v351 = vpack.c.b16 %v307, %v305
      %v352 = vpack.c.b16 %v308, %v306
      %v353 = vpack.c.b16 %v311, %v309
      %v354 = vpack.c.b16 %v312, %v310
      %v355 = vpack.c.b16 %v315, %v313
      %v356 = vpack.c.b16 %v316, %v314
      %v357 = vpack.c.b16 %v319, %v317
      %v358 = vpack.c.b16 %v320, %v318
      %v359 = vpack.c.b16 %v323, %v321
      %v360 = vpack.c.b16 %v324, %v322
      %v361 = vpack.c.b16 %v327, %v325
      %v362 = vpack.c.b16 %v328, %v326
      %v363 = vpack.c.b16 %v331, %v329
      %v364 = vpack.c.b16 %v332, %v330
      %v401 = vunpack.c.l.b16 %v210
      %v402 = vunpack.c.l.b16 %v211
      %v403 = vunpack.c.l.b16 %v212
      %v404 = vunpack.c.l.b16 %v213
      %v405 = vunpack.c.l.b16 %v214
      %v406 = vunpack.c.l.b16 %v215
      %v407 = vunpack.c.l.b16 %v216
      %v408 = vunpack.c.l.b16 %v217
      %v409 = vunpack.c.l.b16 %v218
      %v410 = vunpack.c.l.b16 %v219
      %v411 = vunpack.c.l.b16 %v220
      %v412 = vunpack.c.l.b16 %v221
      %v413 = vunpack.c.l.b16 %v222
      %v414 = vunpack.c.l.b16 %v223
      %v415 = vunpack.c.l.b16 %v224
      %v416 = vunpack.c.l.b16 %v225
      %v417 = vunpack.c.l.b16 %v226
      %v418 = vunpack.c.l.b16 %v227
      %v419 = vunpack.c.l.b16 %v228
      %v420 = vunpack.c.l.b16 %v229
      %v421 = vpack.c.b16 %v402, %v401
      %v422 = vpack.c.b16 %v404, %v403
      %v423 = vpack.c.b16 %v406, %v405
      %v424 = vpack.c.b16 %v408, %v407
      %v425 = vpack.c.b16 %v410, %v409
      %v426 = vpack.c.b16 %v412, %v411
      %v427 = vpack.c.b16 %v414, %v413
      %v428 = vpack.c.b16 %v416, %v415
      %v429 = vpack.c.b16 %v418, %v417
      %v430 = vpack.c.b16 %v420, %v419
      %vm441 = vcmask 261120
      %v443 = vsel %vm441, %v334, 0
      %v446 = vsel %vm441, %v336, 0
      %v449 = vsel %vm441, %v338, 0
      %v452 = vsel %vm441, %v340, 0
      %v455 = vsel %vm441, %v342, 0
      %v458 = vsel %vm441, %v344, 0
      %v461 = vsel %vm441, %v346, 0
      %v464 = vsel %vm441, %v348, 0
      %v467 = vsel %vm441, %v350, 0
      %v470 = vsel %vm441, %v352, 0
      %v473 = vsel %vm441, %v354, 0
      %v476 = vsel %vm441, %v356, 0
      %v479 = vsel %vm441, %v358, 0
      %v482 = vsel %vm441, %v360, 0
      %v485 = vsel %vm441, %v362, 0
      %v488 = vsel %vm441, %v364, 0
      %490 = vmatprep.subr.bf16.mxu0 0
      %491 = vmatpush1.bf16.msra.mxu0 %v421
      %492 = vmatprep.subr.bf16.mxu0 0
      %493 = vmatpush1.bf16.msra.mxu0 %v422
      %494 = vmatprep.subr.bf16.mxu0 0
      %495 = vmatpush1.bf16.msra.mxu0 %v423
      %496 = vmatprep.subr.bf16.mxu0 0
      %497 = vmatpush1.bf16.msra.mxu0 %v424
      %498 = vmatprep.subr.bf16.mxu0 0
      %499 = vmatpush1.bf16.msra.mxu0 %v425
      %500 = vmatprep.subr.bf16.mxu0 0
      %501 = vmatpush1.bf16.msra.mxu0 %v426
      %502 = vmatprep.subr.bf16.mxu0 0
      %503 = vmatpush1.bf16.msra.mxu0 %v427
      %504 = vmatprep.subr.bf16.mxu0 0
      %505 = vmatpush1.bf16.msra.mxu0 %v428
      %506 = vmatprep.subr.bf16.mxu0 0
      %507 = vmatpush1.bf16.msra.mxu0 %v429
      %508 = vmatprep.subr.bf16.mxu0 0
      %509 = vmatpush1.bf16.msra.mxu0 %v430
      %510 = vmatprep.subr.bf16.mxu0 0
      %511 = vmatpush1.bf16.msra.mxu0 0
      %512 = vmatprep.subr.bf16.mxu0 0
      %513 = vmatpush1.bf16.msra.mxu0 0
      %514 = vmatprep.subr.bf16.mxu0 0
      %515 = vmatpush1.bf16.msra.mxu0 0
      %516 = vmatprep.subr.bf16.mxu0 0
      %517 = vmatpush1.bf16.msra.mxu0 0
      %518 = vmatprep.subr.bf16.mxu0 0
      %519 = vmatpush1.bf16.msra.mxu0 0
      %520 = vmatprep.subr.bf16.mxu0 0
      %521 = vmatpush1.bf16.msra.mxu0 0
      %522 = vmatprep.mubr.bf16.mxu0 %v443
      %523 = vmatmul.mubr.bf16.gmra.mrb[0].mxu0 %v333
      %v524 = vpop.f32.mrb[0].mxu0
      %v525 = vadd.f32 %v235, %v524
      %v526 = vpop.f32.mrb[0].mxu0
      %v527 = vpop.f32.mrb[0].mxu0
      %v528 = vadd.f32 %v235, %v527
      %v529 = vpop.f32.mrb[0].mxu0
      %530 = vmatprep.mubr.bf16.mxu0 %v446
      %531 = vmatmul.mubr.bf16.gmra.mrb[0].mxu0 %v335
      %v532 = vpop.f32.mrb[0].mxu0
      %v533 = vadd.f32 %v235, %v532
      %v534 = vpop.f32.mrb[0].mxu0
      %v535 = vpop.f32.mrb[0].mxu0
      %v536 = vadd.f32 %v235, %v535
      %v537 = vpop.f32.mrb[0].mxu0
      %538 = vmatprep.mubr.bf16.mxu0 %v449
      %539 = vmatmul.mubr.bf16.gmra.mrb[0].mxu0 %v337
      %v540 = vpop.f32.mrb[0].mxu0
      %v541 = vadd.f32 %v235, %v540
      %v542 = vpop.f32.mrb[0].mxu0
      %v543 = vpop.f32.mrb[0].mxu0
      %v544 = vadd.f32 %v235, %v543
      %v545 = vpop.f32.mrb[0].mxu0
      %546 = vmatprep.mubr.bf16.mxu0 %v452
      %547 = vmatmul.mubr.bf16.gmra.mrb[0].mxu0 %v339
      %v548 = vpop.f32.mrb[0].mxu0
      %v549 = vadd.f32 %v235, %v548
      %v550 = vpop.f32.mrb[0].mxu0
      %v551 = vpop.f32.mrb[0].mxu0
      %v552 = vadd.f32 %v235, %v551
      %v553 = vpop.f32.mrb[0].mxu0
      %554 = vmatprep.mubr.bf16.mxu0 %v455
      %555 = vmatmul.mubr.bf16.gmra.mrb[0].mxu0 %v341
      %v556 = vpop.f32.mrb[0].mxu0
      %v557 = vadd.f32 %v235, %v556
      %v558 = vpop.f32.mrb[0].mxu0
      %v559 = vpop.f32.mrb[0].mxu0
      %v560 = vadd.f32 %v235, %v559
      %v561 = vpop.f32.mrb[0].mxu0
      %562 = vmatprep.mubr.bf16.mxu0 %v458
      %563 = vmatmul.mubr.bf16.gmra.mrb[0].mxu0 %v343
      %v564 = vpop.f32.mrb[0].mxu0
      %v565 = vadd.f32 %v235, %v564
      %v566 = vpop.f32.mrb[0].mxu0
      %v567 = vpop.f32.mrb[0].mxu0
      %v568 = vadd.f32 %v235, %v567
      %v569 = vpop.f32.mrb[0].mxu0
      %570 = vmatprep.mubr.bf16.mxu0 %v461
      %571 = vmatmul.mubr.bf16.gmra.mrb[0].mxu0 %v345
      %v572 = vpop.f32.mrb[0].mxu0
      %v573 = vadd.f32 %v235, %v572
      %v574 = vpop.f32.mrb[0].mxu0
      %v575 = vpop.f32.mrb[0].mxu0
      %v576 = vadd.f32 %v235, %v575
      %v577 = vpop.f32.mrb[0].mxu0
      %578 = vmatprep.mubr.bf16.mxu0 %v464
      %579 = vmatmul.mubr.bf16.gmra.mrb[0].mxu0 %v347
      %v580 = vpop.f32.mrb[0].mxu0
      %v581 = vadd.f32 %v235, %v580
      %v582 = vpop.f32.mrb[0].mxu0
      %v583 = vpop.f32.mrb[0].mxu0
      %v584 = vadd.f32 %v235, %v583
      %v585 = vpop.f32.mrb[0].mxu0
      %586 = vmatprep.mubr.bf16.mxu0 %v467
      %587 = vmatmul.mubr.bf16.gmra.mrb[0].mxu0 %v349
      %v588 = vpop.f32.mrb[0].mxu0
      %v589 = vadd.f32 %v235, %v588
      %v590 = vpop.f32.mrb[0].mxu0
      %v591 = vpop.f32.mrb[0].mxu0
      %v592 = vadd.f32 %v235, %v591
      %v593 = vpop.f32.mrb[0].mxu0
      %594 = vmatprep.mubr.bf16.mxu0 %v470
      %595 = vmatmul.mubr.bf16.gmra.mrb[0].mxu0 %v351
      %v596 = vpop.f32.mrb[0].mxu0
      %v597 = vadd.f32 %v235, %v596
      %v598 = vpop.f32.mrb[0].mxu0
      %v599 = vpop.f32.mrb[0].mxu0
      %v600 = vadd.f32 %v235, %v599
      %v601 = vpop.f32.mrb[0].mxu0
      %602 = vmatprep.mubr.bf16.mxu0 %v473
      %603 = vmatmul.mubr.bf16.gmra.mrb[0].mxu0 %v353
      %v604 = vpop.f32.mrb[0].mxu0
      %v605 = vadd.f32 %v235, %v604
      %v606 = vpop.f32.mrb[0].mxu0
      %v607 = vpop.f32.mrb[0].mxu0
      %v608 = vadd.f32 %v235, %v607
      %v609 = vpop.f32.mrb[0].mxu0
      %610 = vmatprep.mubr.bf16.mxu0 %v476
      %611 = vmatmul.mubr.bf16.gmra.mrb[0].mxu0 %v355
      %v612 = vpop.f32.mrb[0].mxu0
      %v613 = vadd.f32 %v235, %v612
      %v614 = vpop.f32.mrb[0].mxu0
      %v615 = vpop.f32.mrb[0].mxu0
      %v616 = vadd.f32 %v235, %v615
      %v617 = vpop.f32.mrb[0].mxu0
      %618 = vmatprep.mubr.bf16.mxu0 %v479
      %619 = vmatmul.mubr.bf16.gmra.mrb[0].mxu0 %v357
      %v620 = vpop.f32.mrb[0].mxu0
      %v621 = vadd.f32 %v235, %v620
      %v622 = vpop.f32.mrb[0].mxu0
      %v623 = vpop.f32.mrb[0].mxu0
      %v624 = vadd.f32 %v235, %v623
      %v625 = vpop.f32.mrb[0].mxu0
      %626 = vmatprep.mubr.bf16.mxu0 %v482
      %627 = vmatmul.mubr.bf16.gmra.mrb[0].mxu0 %v359
      %v628 = vpop.f32.mrb[0].mxu0
      %v629 = vadd.f32 %v235, %v628
      %v630 = vpop.f32.mrb[0].mxu0
      %v631 = vpop.f32.mrb[0].mxu0
      %v632 = vadd.f32 %v235, %v631
      %v633 = vpop.f32.mrb[0].mxu0
      %634 = vmatprep.mubr.bf16.mxu0 %v485
      %635 = vmatmul.mubr.bf16.gmra.mrb[0].mxu0 %v361
      %v636 = vpop.f32.mrb[0].mxu0
      %v637 = vadd.f32 %v235, %v636
      %v638 = vpop.f32.mrb[0].mxu0
      %v639 = vpop.f32.mrb[0].mxu0
      %v640 = vadd.f32 %v235, %v639
      %v641 = vpop.f32.mrb[0].mxu0
      %642 = vmatprep.mubr.bf16.mxu0 %v488
      %643 = vmatmul.mubr.bf16.gmra.mrb[0].mxu0 %v363
      %v644 = vpop.f32.mrb[0].mxu0
      %v645 = vadd.f32 %v235, %v644
      %v646 = vpop.f32.mrb[0].mxu0
      %v647 = vpop.f32.mrb[0].mxu0
      %v648 = vadd.f32 %v235, %v647
      %v649 = vpop.f32.mrb[0].mxu0
      %650 = vdwg.mxu0
      %v651 = vmax.f32 %v525, 0.0
      %v652 = vmax.f32 %v528, 0.0
      %v653 = vmax.f32 %v533, 0.0
      %v654 = vmax.f32 %v536, 0.0
      %v655 = vmax.f32 %v541, 0.0
      %v656 = vmax.f32 %v544, 0.0
      %v657 = vmax.f32 %v549, 0.0
      %v658 = vmax.f32 %v552, 0.0
      %v659 = vmax.f32 %v557, 0.0
      %v660 = vmax.f32 %v560, 0.0
      %v661 = vmax.f32 %v565, 0.0
      %v662 = vmax.f32 %v568, 0.0
      %v663 = vmax.f32 %v573, 0.0
      %v664 = vmax.f32 %v576, 0.0
      %v665 = vmax.f32 %v581, 0.0
      %v666 = vmax.f32 %v584, 0.0
      %v667 = vmax.f32 %v589, 0.0
      %v668 = vmax.f32 %v592, 0.0
      %v669 = vmax.f32 %v597, 0.0
      %v670 = vmax.f32 %v600, 0.0
      %v671 = vmax.f32 %v605, 0.0
      %v672 = vmax.f32 %v608, 0.0
      %v673 = vmax.f32 %v613, 0.0
      %v674 = vmax.f32 %v616, 0.0
      %v675 = vmax.f32 %v621, 0.0
      %v676 = vmax.f32 %v624, 0.0
      %v677 = vmax.f32 %v629, 0.0
      %v678 = vmax.f32 %v632, 0.0
      %v679 = vmax.f32 %v637, 0.0
      %v680 = vmax.f32 %v640, 0.0
      %v681 = vmax.f32 %v645, 0.0
      %v682 = vmax.f32 %v648, 0.0
      %v683 = vpack.c.bf16 %v652, %v651
      %v684 = vpack.c.bf16 %v654, %v653
      %v685 = vpack.c.bf16 %v656, %v655
      %v686 = vpack.c.bf16 %v658, %v657
      %v687 = vpack.c.bf16 %v660, %v659
      %v688 = vpack.c.bf16 %v662, %v661
      %v689 = vpack.c.bf16 %v664, %v663
      %v690 = vpack.c.bf16 %v666, %v665
      %v691 = vpack.c.bf16 %v668, %v667
      %v692 = vpack.c.bf16 %v670, %v669
      %v693 = vpack.c.bf16 %v672, %v671
      %v694 = vpack.c.bf16 %v674, %v673
      %v695 = vpack.c.bf16 %v676, %v675
      %v696 = vpack.c.bf16 %v678, %v677
      %v697 = vpack.c.bf16 %v680, %v679
      %v698 = vpack.c.bf16 %v682, %v681
      %v715 = vunpack.c.l.b16 %v683
      %v716 = vunpack.c.h.b16 %v683
      %v717 = vunpack.c.l.b16 %v684
      %v718 = vunpack.c.h.b16 %v684
      %v719 = vunpack.c.l.b16 %v685
      %v720 = vunpack.c.h.b16 %v685
      %v721 = vunpack.c.l.b16 %v686
      %v722 = vunpack.c.h.b16 %v686
      %v723 = vunpack.c.l.b16 %v687
      %v724 = vunpack.c.h.b16 %v687
      %v725 = vunpack.c.l.b16 %v688
      %v726 = vunpack.c.h.b16 %v688
      %v727 = vunpack.c.l.b16 %v689
      %v728 = vunpack.c.h.b16 %v689
      %v729 = vunpack.c.l.b16 %v690
      %v730 = vunpack.c.h.b16 %v690
      %v731 = vunpack.c.l.b16 %v691
      %v732 = vunpack.c.h.b16 %v691
      %v733 = vunpack.c.l.b16 %v692
      %v734 = vunpack.c.h.b16 %v692
      %v735 = vunpack.c.l.b16 %v693
      %v736 = vunpack.c.h.b16 %v693
      %v737 = vunpack.c.l.b16 %v694
      %v738 = vunpack.c.h.b16 %v694
      %v739 = vunpack.c.l.b16 %v695
      %v740 = vunpack.c.h.b16 %v695
      %v741 = vunpack.c.l.b16 %v696
      %v742 = vunpack.c.h.b16 %v696
      %v743 = vunpack.c.l.b16 %v697
      %v744 = vunpack.c.h.b16 %v697
      %v745 = vunpack.c.l.b16 %v698
      %v746 = vunpack.c.h.b16 %v698
      %v747 = vpack.c.b16 %v715, %v715
      %v748 = vpack.c.b16 %v716, %v716
      %v749 = vpack.c.b16 %v717, %v717
      %v750 = vpack.c.b16 %v718, %v718
      %v751 = vpack.c.b16 %v719, %v719
      %v752 = vpack.c.b16 %v720, %v720
      %v753 = vpack.c.b16 %v721, %v721
      %v754 = vpack.c.b16 %v722, %v722
      %v755 = vpack.c.b16 %v723, %v723
      %v756 = vpack.c.b16 %v724, %v724
      %v757 = vpack.c.b16 %v725, %v725
      %v758 = vpack.c.b16 %v726, %v726
      %v759 = vpack.c.b16 %v727, %v727
      %v760 = vpack.c.b16 %v728, %v728
      %v761 = vpack.c.b16 %v729, %v729
      %v762 = vpack.c.b16 %v730, %v730
      %v763 = vpack.c.b16 %v731, %v731
      %v764 = vpack.c.b16 %v732, %v732
      %v765 = vpack.c.b16 %v733, %v733
      %v766 = vpack.c.b16 %v734, %v734
      %v767 = vpack.c.b16 %v735, %v735
      %v768 = vpack.c.b16 %v736, %v736
      %v769 = vpack.c.b16 %v737, %v737
      %v770 = vpack.c.b16 %v738, %v738
      %v771 = vpack.c.b16 %v739, %v739
      %v772 = vpack.c.b16 %v740, %v740
      %v773 = vpack.c.b16 %v741, %v741
      %v774 = vpack.c.b16 %v742, %v742
      %v775 = vpack.c.b16 %v743, %v743
      %v776 = vpack.c.b16 %v744, %v744
      %v777 = vpack.c.b16 %v745, %v745
      %v778 = vpack.c.b16 %v746, %v746
      %vm811 = vcmask 519168
      %812 = vst.msk [vmem:[%s175] sm:$0xf] %vm811, %v747
      %813 = vst.msk [vmem:[%s175 + $0x4] sm:$0xf] %vm811, %v748
      %814 = vst.msk [vmem:[%s175 + $0x8] sm:$0xf] %vm811, %v749
      %815 = vst.msk [vmem:[%s175 + $0xc] sm:$0xf] %vm811, %v750
      %816 = vst.msk [vmem:[%s175 + $0x10] sm:$0xf] %vm811, %v751
      %817 = vst.msk [vmem:[%s175 + $0x14] sm:$0xf] %vm811, %v752
      %818 = vst.msk [vmem:[%s175 + $0x18] sm:$0xf] %vm811, %v753
      %819 = vst.msk [vmem:[%s175 + $0x1c] sm:$0xf] %vm811, %v754
      %820 = vst.msk [vmem:[%s175 + $0x20] sm:$0xf] %vm811, %v755
      %821 = vst.msk [vmem:[%s175 + $0x24] sm:$0xf] %vm811, %v756
      %822 = vst.msk [vmem:[%s175 + $0x28] sm:$0xf] %vm811, %v757
      %823 = vst.msk [vmem:[%s175 + $0x2c] sm:$0xf] %vm811, %v758
      %824 = vst.msk [vmem:[%s175 + $0x30] sm:$0xf] %vm811, %v759
      %825 = vst.msk [vmem:[%s175 + $0x34] sm:$0xf] %vm811, %v760
      %826 = vst.msk [vmem:[%s175 + $0x38] sm:$0xf] %vm811, %v761
      %827 = vst.msk [vmem:[%s175 + $0x3c] sm:$0xf] %vm811, %v762
      %828 = vst.msk [vmem:[%s175 + $0x40] sm:$0xf] %vm811, %v763
      %829 = vst.msk [vmem:[%s175 + $0x44] sm:$0xf] %vm811, %v764
      %830 = vst.msk [vmem:[%s175 + $0x48] sm:$0xf] %vm811, %v765
      %831 = vst.msk [vmem:[%s175 + $0x4c] sm:$0xf] %vm811, %v766
      %832 = vst.msk [vmem:[%s175 + $0x50] sm:$0xf] %vm811, %v767
      %833 = vst.msk [vmem:[%s175 + $0x54] sm:$0xf] %vm811, %v768
      %834 = vst.msk [vmem:[%s175 + $0x58] sm:$0xf] %vm811, %v769
      %835 = vst.msk [vmem:[%s175 + $0x5c] sm:$0xf] %vm811, %v770
      %836 = vst.msk [vmem:[%s175 + $0x60] sm:$0xf] %vm811, %v771
      %837 = vst.msk [vmem:[%s175 + $0x64] sm:$0xf] %vm811, %v772
      %838 = vst.msk [vmem:[%s175 + $0x68] sm:$0xf] %vm811, %v773
      %839 = vst.msk [vmem:[%s175 + $0x6c] sm:$0xf] %vm811, %v774
      %840 = vst.msk [vmem:[%s175 + $0x70] sm:$0xf] %vm811, %v775
      %841 = vst.msk [vmem:[%s175 + $0x74] sm:$0xf] %vm811, %v776
      %842 = vst.msk [vmem:[%s175 + $0x78] sm:$0xf] %vm811, %v777
      %843 = vst.msk [vmem:[%s175 + $0x7c] sm:$0xf] %vm811, %v778
      %s844 = smul.u32 32, %s14
      %p845 = scmp.lt.s32.totalorder %s844, 255
      %s846 = scalar_select %p845, %s844, 255
      %s847 = smul.addr %s846, 4
      %s848 = scalar_lea.vmem %s3, %s847
      // Predicated region
      $region33: #{tpu_custom_call.1} parent=31 // pred_check
        %p849 = pneg %p100
      $region34: #{tpu_custom_call.1} parent=31 // pred_check_branch
        %851 = sbr.rel (%p849) target = $region36
      $region35: #{tpu_custom_call.1} parent=31 // pred_region
        %s852 = smul.u32 32, %s14
      $region36: #{tpu_custom_call.1} parent=31 // pred_fallthru
        _
    $region32: #{tpu_custom_call.1} parent=5 // pred_fallthru
      _
    %p853 = scmp.le.s32.totalorder 2, %s9
    // Predicated region
    $region37: #{tpu_custom_call.1} parent=5 // pred_check
      %p854 = pneg %p853
    $region38: #{tpu_custom_call.1} parent=5 // pred_check_branch
      %856 = sbr.rel (%p854) target = $region40
    $region39: #{tpu_custom_call.1} parent=5 // pred_region
      %s857 = ssub.s32 %s9, 2
      // Predicated region
      $region41: #{tpu_custom_call.1} parent=39 // pred_check
        %p858 = pneg %p106
      $region42: #{tpu_custom_call.1} parent=39 // pred_check_branch
        %860 = sbr.rel (%p858) target = $region44
      $region43: #{tpu_custom_call.1} parent=39 // pred_region
        %s861 = smul.u32 32, %s15
        %p862 = scmp.lt.s32.totalorder %s861, 255
        %s863 = scalar_select %p862, %s861, 255
        %s864 = smul.addr %s863, 4
        %s865 = scalar_lea.vmem %s3, %s864
      $region44: #{tpu_custom_call.1} parent=39 // pred_fallthru
        _
    $region40: #{tpu_custom_call.1} parent=5 // pred_fallthru
      _
  $region6: #{tpu_custom_call.1} parent=0 // loop_footer
    %s13 = sadd.s32 1, %s9
  $region7: #{tpu_custom_call.1} parent=0 // loop_footer_branch
    %8 = sbr.rel target = $region3
  $region8: #{tpu_custom_call.1} parent=0 // loop_exit
    _

</llo_original>
